<compile_context>
chip_gen: v7x
topology: tpu7x:2x2x1
jax: 0.10.0
libtpu: 0.0.40
codegen_flags: <defaults>
</compile_context>

<pallas_src>
import jax
import jax.numpy as jnp
from jax.experimental import pallas as pl
from jax.experimental.pallas import tpu as pltpu

_LANES = 128
_SUBLANES = 8


def make_positional_encoding_table(d_model: int, context_length: int = 512) -> jnp.ndarray:
    """Replicates PositionalEncoding.__init__ buffer construction (even d_model)."""
    assert d_model % 2 == 0, "sinusoidal PE table requires even d_model"
    div_term = jnp.exp(
        jnp.arange(0, d_model, 2, dtype=jnp.float32) / d_model * -jnp.log(10000.0)
    )  # (d_model//2,)
    pos = jnp.arange(context_length, dtype=jnp.float32)[:, None]  # (L, 1)
    pe = jnp.zeros((context_length, d_model), dtype=jnp.float32)
    pe = pe.at[:, 0::2].set(jnp.sin(pos * div_term))
    pe = pe.at[:, 1::2].set(jnp.cos(pos * div_term))
    return pe


def _pe_add_kernel(x_ref, pe_ref, o_ref):
    # Elementwise hot path: add positional encodings to embeddings.
    o_ref[...] = x_ref[...] + pe_ref[...]


def _pick_tile_rows(n_rows: int, row_bytes: int, target_bytes: int = 1 << 20) -> int:
    """Row-tile: multiple of 8 sublanes, ~<= target_bytes per (double-)buffer."""
    by_bytes = max(_SUBLANES, (target_bytes // max(row_bytes, 1)) // _SUBLANES * _SUBLANES)
    rows_rounded = ((n_rows + _SUBLANES - 1) // _SUBLANES) * _SUBLANES
    return min(by_bytes, rows_rounded)


@jax.jit
def positional_encoding_forward(x: jnp.ndarray, pe: jnp.ndarray) -> jnp.ndarray:
    """Forward pass: x + pe[:x.shape[0], :].

    x : (seq_len, d_model)
    pe: (context_length, d_model)
    """
    seq_len, d_model = x.shape
    context_length, pe_d = pe.shape
    assert pe_d == d_model, "pe / x feature-dim mismatch"
    assert seq_len <= context_length, "sequence longer than the PE table"

    itemsize = jnp.dtype(x.dtype).itemsize

    # Lane-dense fast path: if d_model < a full 128-lane vreg row, view the
    # row-major contiguous (rows, d_model) arrays as (rows*d_model/128, 128).
    # Flattening preserves element order, so the elementwise add is unchanged
    # and row-block i of the flattened pe covers exactly the same elements as
    # row-block i of the flattened x.
    use_flat = (
        d_model % _LANES != 0
        and (seq_len * d_model) % _LANES == 0
        and (context_length * d_model) % _LANES == 0
        and ((seq_len * d_model) // _LANES) % _SUBLANES == 0
    )

    if use_flat:
        x_in = x.reshape(-1, _LANES)
        pe_in = pe.reshape(-1, _LANES)
    else:
        x_in = x
        pe_in = pe

    n_rows, n_cols = x_in.shape
    tile_rows = _pick_tile_rows(n_rows, n_cols * itemsize)
    grid = (pl.cdiv(n_rows, tile_rows),)

    out = pl.pallas_call(
        _pe_add_kernel,
        out_shape=jax.ShapeDtypeStruct((n_rows, n_cols), x.dtype),
        grid=grid,
        in_specs=[
            pl.BlockSpec((tile_rows, n_cols), lambda i: (i, 0)),
            # Full PE buffer passed; BlockSpec picks the matching row-block, so
            # no wrapper-side pe[:seq_len] copy is materialized in HBM.
            pl.BlockSpec((tile_rows, n_cols), lambda i: (i, 0)),
        ],
        out_specs=pl.BlockSpec((tile_rows, n_cols), lambda i: (i, 0)),
        input_output_aliases={0: 0},  # in-place add when x's buffer is donatable
        compiler_params=pltpu.CompilerParams(
            dimension_semantics=("parallel",),  # independent row tiles (v7x: 2 TCs)
        ),
    )(x_in, pe_in)

    return out.reshape(seq_len, d_model) if use_flat else out


if __name__ == "__main__":
    d_model = 32
    context_length = 512

    pe = make_positional_encoding_table(d_model, context_length)
    k1, k2 = jax.random.split(jax.random.PRNGKey(0))

    # Case 1: small sequence (seq=8, hidden=32) -> 2D tiled path.
    x_small = jax.random.normal(k1, (8, d_model), dtype=jnp.float32)
    ref_small = x_small + pe[:8, :]
    out_small = jax.block_until_ready(positional_encoding_forward(x_small, pe))
    assert out_small.shape == x_small.shape
    assert jnp.allclose(out_small, ref_small, atol=1e-6), "mismatch vs reference (2D path)"

    # Case 2: longer sequence -> lane-dense flattened path (d_model=32 < 128).
    x_long = jax.random.normal(k2, (256, d_model), dtype=jnp.float32)
    ref_long = x_long + pe[:256, :]
    out_long = jax.block_until_ready(positional_encoding_forward(x_long, pe))
    assert out_long.shape == x_long.shape
    assert jnp.allclose(out_long, ref_long, atol=1e-6), "mismatch vs reference (flat path)"

    print("KERNEL_OK")
</pallas_src>

<mosaic_0001>
module attributes {stable_mosaic.version = 11 : i64} {
  func.func @_pe_add_kernel(%arg0: i32, %arg1: memref<8x32xf32, #tpu.memory_space<vmem>>, %arg2: memref<8x32xf32, #tpu.memory_space<vmem>>, %arg3: memref<8x32xf32, #tpu.memory_space<vmem>>) attributes {dimension_semantics = [#tpu.dimension_semantics<parallel>], iteration_bounds = array<i64: 1>, scalar_prefetch = 0 : i64, scratch_operands = 0 : i64, tpu.core_type = #tpu.core_type<tc>, window_params = [{transform_indices = @transform_0, window_bounds = array<i64: 8, 32>}, {transform_indices = @transform_1, window_bounds = array<i64: 8, 32>}, {transform_indices = @transform_2, window_bounds = array<i64: 8, 32>}]} {
    %c0 = arith.constant 0 : index
    %c0_0 = arith.constant 0 : index
    %0 = vector.load %arg1[%c0, %c0_0] : memref<8x32xf32, #tpu.memory_space<vmem>>, vector<8x32xf32>
    %c0_1 = arith.constant 0 : index
    %c0_2 = arith.constant 0 : index
    %1 = vector.load %arg2[%c0_1, %c0_2] : memref<8x32xf32, #tpu.memory_space<vmem>>, vector<8x32xf32>
    %2 = arith.addf %0, %1 : vector<8x32xf32>
    %c0_3 = arith.constant 0 : index
    %c0_4 = arith.constant 0 : index
    %3 = vector.load %arg3[%c0_3, %c0_4] : memref<8x32xf32, #tpu.memory_space<vmem>>, vector<8x32xf32>
    tpu.vector_store %arg3[%c0_3, %c0_4], %2 {strides = array<i32>} : memref<8x32xf32, #tpu.memory_space<vmem>>, vector<8x32xf32>,
    return
  }
  func.func @transform_0(%arg0: i32) -> (i32, i32) {
    %c0_i32 = arith.constant 0 : i32
    %c0_i32_0 = arith.constant 0 : i32
    return %arg0, %c0_i32 : i32, i32
  }
  func.func @transform_1(%arg0: i32) -> (i32, i32) {
    %c0_i32 = arith.constant 0 : i32
    %c0_i32_0 = arith.constant 0 : i32
    return %arg0, %c0_i32 : i32, i32
  }
  func.func @transform_2(%arg0: i32) -> (i32, i32) {
    %c0_i32 = arith.constant 0 : i32
    %c0_i32_0 = arith.constant 0 : i32
    return %arg0, %c0_i32 : i32, i32
  }
}

</mosaic_0001>

<llo_original>
// kernel: positional_encoding_forward.1
$region0: #{positional_encoding_forward.1}
  #allocation0 [shape = 'u32[]', space=smem, size = 0x4, offset = 0x4, fixed_abs, tag = 'smem constant byte address 0x4 - core index']
  #allocation1 [shape = 'u32[144,128]{1,0:T(1,128)}', space=vmem, size = 0x12000, scoped, tag = 'internal scratch']
  %s0 = inlined_call_operand.hbm [shape: f32[8,32], index: 0, kind: input, shape index: {}, may-alias: {0,2}]
  %s1 = inlined_call_operand.vmem [shape: f32[512,32], index: 1, kind: input, shape index: {}]
  %s2 = inlined_call_operand.hbm [shape: f32[8,32], index: 2, kind: output, shape index: {}, may-alias: {0,2}]
  %s3 = sld [smem:[#allocation0]]
  $region22: #{positional_encoding_forward.1} parent=0
    _
  %s5 = ssub.s32 1, %s3
  %s6 = scalar_select 0, %s5, %s3
  $region1: #{positional_encoding_forward.1} parent=0
    #allocation2 [shape = 'u8[4096]{0}', space=vmem, size = 0x1000, scoped, tag = 'input window, operand 0, single buffered']
    #allocation3 [shape = 's32[1]{0}', space=sflag, size = 0x4, scoped, tag = 'scoped memory for positional_encoding_forward.1']
    #allocation4 [shape = 's32[1]{0}', space=sflag, size = 0x4, scoped, tag = 'scoped memory for positional_encoding_forward.1']
    #allocation5 [shape = 'u8[4096]{0}', space=vmem, size = 0x1000, scoped, tag = 'output window, operand 0, single buffered']
    %7 = vsyncpa [#allocation3], 0
    %8 = vsyncpa [#allocation4], 0
    // Predicated region
    $region2: #{positional_encoding_forward.1} parent=1 // pred_check
      _
    $region3: #{positional_encoding_forward.1} parent=1 // pred_check_branch
      %10 = sbr.rel (0) target = $region5
    $region4: #{positional_encoding_forward.1} parent=1 // pred_region
      %s12 = ssub.s32 128, 128
      %13 = vsyncadd [#allocation3], %s12
      %s15 = sshll.u32 [#allocation2], 4
      %s16 = int_to_ptr.vmem [resolvable:$true] %s15
      %18 = dma.hbm_to_vmem [thread:$0]  %s0, 128, %s16, [#allocation3]
    $region5: #{positional_encoding_forward.1} parent=1 // pred_fallthru
      _
    // Predicated region
    $region6: #{positional_encoding_forward.1} parent=1 // pred_check
      _
    $region7: #{positional_encoding_forward.1} parent=1 // pred_check_branch
      %20 = sbr.rel (0) target = $region9
    $region8: #{positional_encoding_forward.1} parent=1 // pred_region
      _
    $region9: #{positional_encoding_forward.1} parent=1 // pred_fallthru
      _
    // Predicated region
    $region10: #{positional_encoding_forward.1} parent=1 // pred_check
      _
    $region11: #{positional_encoding_forward.1} parent=1 // pred_check_branch
      %22 = sbr.rel (0) target = $region13
    $region12: #{positional_encoding_forward.1} parent=1 // pred_region
      %23 = dma.done [#allocation3], 128
    $region13: #{positional_encoding_forward.1} parent=1 // pred_fallthru
      _
    %v24 = vld [vmem:[#allocation2] sm:$0xff]
    %v25 = vld [vmem:[%s1] sm:$0xff]
    %v26 = vadd.f32 %v24, %v25
    %vm27 = vcmask 261120
    %28 = vst.msk [vmem:[#allocation5] sm:$0xff] %vm27, %v26
    // Predicated region
    $region14: #{positional_encoding_forward.1} parent=1 // pred_check
      _
    $region15: #{positional_encoding_forward.1} parent=1 // pred_check_branch
      %30 = sbr.rel (0) target = $region17
    $region16: #{positional_encoding_forward.1} parent=1 // pred_region
      %s32 = ssub.s32 128, 128
      %33 = vsyncadd [#allocation4], %s32
      %s35 = sshll.u32 [#allocation5], 4
      %s36 = int_to_ptr.vmem [resolvable:$true] %s35
      %38 = dma.vmem_to_hbm [thread:$0]  %s36, 128, %s2, [#allocation4]
    $region17: #{positional_encoding_forward.1} parent=1 // pred_fallthru
      _
    // Predicated region
    $region18: #{positional_encoding_forward.1} parent=1 // pred_check
      _
    $region19: #{positional_encoding_forward.1} parent=1 // pred_check_branch
      %40 = sbr.rel (0) target = $region21
    $region20: #{positional_encoding_forward.1} parent=1 // pred_region
      %41 = dma.done [#allocation4], 128
    $region21: #{positional_encoding_forward.1} parent=1 // pred_fallthru
      _
    %42 = vsyncpa [#allocation3], 1
    %43 = vsyncpa [#allocation4], 1

</llo_original>
